<compile_context>
chip_gen: v7x
topology: tpu7x:2x2x1
jax: 0.10.0
libtpu: 0.0.40
codegen_flags: <defaults>
</compile_context>

<pallas_src>
import math
import functools

import jax
import jax.numpy as jnp
from jax.experimental import pallas as pl
from jax.experimental.pallas import tpu as pltpu


def _gauss_taps_1d(kernel_size: int, sigma: float):
    """Normalized 1-D Gaussian taps as Python floats (constant-folded into the kernel).

    The torch module builds k2 = (1/(2*pi*s^2)) * outer(e, e), then renormalizes to sum 1,
    which equals outer(e/sum(e), e/sum(e)) -- i.e. exactly separable into these 1-D taps.
    """
    variance = float(sigma) ** 2
    center = (kernel_size - 1) / 2.0
    e = [math.exp(-((i - center) ** 2) / (2.0 * variance)) for i in range(kernel_size)]
    s = sum(e)
    return tuple(v / s for v in e)


def _sym_weighted_sum(slabs, taps):
    """sum_i taps[i] * slabs[i], exploiting the exact symmetry taps[i] == taps[K-1-i].

    Mirrored slabs are added first, then scaled by the shared tap: ceil(K/2) vmuls instead of K.
    The final sum is a balanced tree so independent add chains can overlap in the VLIW schedule.
    """
    K = len(taps)
    terms = [taps[i] * (slabs[i] + slabs[K - 1 - i]) for i in range(K // 2)]
    if K % 2:
        terms.append(taps[K // 2] * slabs[K // 2])
    while len(terms) > 1:
        nxt = [terms[i] + terms[i + 1] for i in range(0, len(terms) - 1, 2)]
        if len(terms) % 2:
            nxt.append(terms[-1])
        terms = nxt
    return terms[0]


def _gauss_smooth_kernel(x_ref, o_ref, *, taps, H, W, p):
    """One band of planes: reflection pad assembled in vregs + separable KxK Gaussian.

    x_ref : (B, H, W) input band (VMEM)
    o_ref : (B, H, W) output band (VMEM)
    """
    K = len(taps)
    # Load once; up-cast in registers only (no f32 intermediate goes back to VMEM).
    x = x_ref[...].astype(jnp.float32)                                   # (B, H, W)

    # ---- ReflectionPad2d along W, built in registers (no VMEM scratch, no padded HBM copy) ----
    left = [x[:, :, p - j:p - j + 1] for j in range(p)]                  # cols p, p-1, ..., 1
    right = [x[:, :, W - 2 - j:W - 1 - j] for j in range(p)]             # cols W-2, ..., W-1-p
    xh = jnp.concatenate(left + [x] + right, axis=2)                     # (B, H, W + 2p)

    # ---- horizontal 1-D pass (lane direction), symmetric taps ----
    # NOTE: at W + 2p <= 128 each padded row is a single vreg, so these lane-offset slices lower
    # to one rotate+select each; for large W generate them with pltpu.roll (XLU) instead.
    th = _sym_weighted_sum([xh[:, :, j:j + W] for j in range(K)], taps)  # (B, H, W)

    # ---- ReflectionPad2d along H, built in registers ----
    top = [th[:, p - r:p - r + 1, :] for r in range(p)]                  # rows p, p-1, ..., 1
    bot = [th[:, H - 2 - r:H - 1 - r, :] for r in range(p)]              # rows H-2, ..., H-1-p
    tv = jnp.concatenate(top + [th] + bot, axis=1)                       # (B, H + 2p, W)

    # ---- vertical 1-D pass (sublane direction), symmetric taps ----
    out = _sym_weighted_sum([tv[:, i:i + H, :] for i in range(K)], taps)  # (B, H, W)

    o_ref[...] = out.astype(o_ref.dtype)


# ----------------------------- generation-aware tiling helpers -----------------------------

def _tpu_kind() -> str:
    try:
        return jax.devices()[0].device_kind.lower()
    except Exception:
        return ""


def _num_tensorcores_per_chip(kind: str) -> int:
    # v7x packs 2 TensorCores per chip (grid "parallel" axes shard across them); v5e/v6e have 1.
    return 2 if "v7" in kind else 1


def _vmem_band_budget_bytes(kind: str) -> int:
    # Per-grid-step budget for band sizing (double-buffered in/out + register/spill slack).
    # v7x has only 64 MiB physical VMEM -> roughly half the headroom of v5e/v6e (128 MiB).
    return (12 << 20) if "v7" in kind else (24 << 20)


def _vmem_limit_bytes(kind: str):
    if "v7" in kind:
        return 32 << 20          # 64 MiB physical on v7x: leave headroom
    if "v5" in kind or "v6" in kind:
        return 64 << 20          # 128 MiB physical on v5e/v6e
    return None                  # unknown generation: keep the compiler default


def _pick_planes_per_step(num_planes, H, W, itemsize, n_tc, vmem_budget):
    """Planes per grid step: one step on single-TC chips if it fits VMEM, >=2 parallel steps on
    v7x so megacore can split the band loop, always capped by the per-generation VMEM budget."""
    # double-buffered in + out blocks, plus ~6 f32-plane equivalents of register/spill slack
    bytes_per_plane = H * W * (2 * 2 * max(itemsize, 1) + 6 * 4)
    cap = max(1, int(vmem_budget // bytes_per_plane))
    target = num_planes if n_tc <= 1 else max(1, -(-num_planes // n_tc))
    pps = int(max(1, min(cap, target, num_planes)))
    # Keep the grid exact.  (If num_planes is prime and > cap this degrades towards 1-plane
    # steps; a ragged last band would fix that, but it is irrelevant at these sizes.)
    while num_planes % pps:
        pps -= 1
    return pps


# ----------------------------------------- wrapper -----------------------------------------

def spatial_gaussian_smooth(x: jnp.ndarray, kernel_size: int, sigma: float) -> jnp.ndarray:
    """Forward pass of SpatialGaussianKernel: ReflectionPad2d((K-1)//2) + fixed depthwise Gaussian."""
    assert kernel_size % 2 == 1, "kernel_size must be odd (matches the torch module's assert)"
    N, C, H, W = x.shape
    K = kernel_size
    p = (K - 1) // 2
    assert p < H and p < W, "reflection padding requires pad < spatial size"

    taps = _gauss_taps_1d(K, sigma)
    NC = N * C
    x_planes = x.reshape(NC, H, W)   # depthwise conv == independent per-(n, c) plane smoothing

    kind = _tpu_kind()
    B = _pick_planes_per_step(NC, H, W, x.dtype.itemsize,
                              _num_tensorcores_per_chip(kind),
                              _vmem_band_budget_bytes(kind))

    kernel = functools.partial(_gauss_smooth_kernel, taps=taps, H=H, W=W, p=p)

    cp_kwargs = dict(dimension_semantics=("parallel",))
    vlim = _vmem_limit_bytes(kind)
    if vlim is not None:
        cp_kwargs["vmem_limit_bytes"] = vlim

    out = pl.pallas_call(
        kernel,
        out_shape=jax.ShapeDtypeStruct((NC, H, W), x.dtype),
        grid=(NC // B,),
        in_specs=[pl.BlockSpec((B, H, W), lambda i: (i, 0, 0))],
        out_specs=pl.BlockSpec((B, H, W), lambda i: (i, 0, 0)),
        compiler_params=pltpu.CompilerParams(**cp_kwargs),
    )(x_planes)
    return out.reshape(N, C, H, W)


def _reference(x: jnp.ndarray, kernel_size: int, sigma: float) -> jnp.ndarray:
    """Pure-JAX reference replicating the torch module (2-D weight, reflect pad, depthwise conv)."""
    N, C, H, W = x.shape
    K = kernel_size
    p = (K - 1) // 2
    variance = sigma ** 2.0
    coords = jnp.arange(K, dtype=jnp.float32) - (K - 1) / 2.0
    g = jnp.exp(-(coords ** 2.0) / (2.0 * variance))
    k2 = (1.0 / (2.0 * math.pi * variance)) * jnp.outer(g, g)
    k2 = k2 / jnp.sum(k2)
    w = jnp.broadcast_to(k2, (C, 1, K, K)).astype(jnp.float32)  # OIHW, groups=C
    x_pad = jnp.pad(x, ((0, 0), (0, 0), (p, p), (p, p)), mode="reflect")
    return jax.lax.conv_general_dilated(
        x_pad, w,
        window_strides=(1, 1),
        padding="VALID",
        dimension_numbers=("NCHW", "OIHW", "NCHW"),
        feature_group_count=C,
    )


if __name__ == "__main__":
    # Module config (kernel_size must be odd).
    kernel_size = 5
    sigma = 1.0
    channels = 4

    key = jax.random.PRNGKey(0)
    x = jax.random.normal(key, (2, channels, 16, 16), dtype=jnp.float32)

    out = jax.block_until_ready(spatial_gaussian_smooth(x, kernel_size, sigma))
    ref = jax.block_until_ready(_reference(x, kernel_size, sigma))

    assert out.shape == x.shape and out.dtype == x.dtype
    assert float(jnp.max(jnp.abs(out - ref))) < 1e-5

    print("KERNEL_OK")
</pallas_src>

<mosaic_0001>
module attributes {stable_mosaic.version = 11 : i64} {
  func.func @_gauss_smooth_kernel(%arg0: i32, %arg1: memref<8x16x16xf32, #tpu.memory_space<vmem>>, %arg2: memref<8x16x16xf32, #tpu.memory_space<vmem>>) attributes {dimension_semantics = [#tpu.dimension_semantics<parallel>], iteration_bounds = array<i64: 1>, scalar_prefetch = 0 : i64, scratch_operands = 0 : i64, tpu.core_type = #tpu.core_type<tc>, window_params = [{transform_indices = @transform_0, window_bounds = array<i64: 8, 16, 16>}, {transform_indices = @transform_1, window_bounds = array<i64: 8, 16, 16>}]} {
    %c0 = arith.constant 0 : index
    %c0_0 = arith.constant 0 : index
    %c0_1 = arith.constant 0 : index
    %0 = vector.load %arg1[%c0, %c0_0, %c0_1] : memref<8x16x16xf32, #tpu.memory_space<vmem>>, vector<8x16x16xf32>
    %1 = vector.extract_strided_slice %0 {offsets = [0, 0, 2], sizes = [8, 16, 1], strides = [1, 1, 1]} : vector<8x16x16xf32> to vector<8x16x1xf32>
    %2 = vector.extract_strided_slice %0 {offsets = [0, 0, 1], sizes = [8, 16, 1], strides = [1, 1, 1]} : vector<8x16x16xf32> to vector<8x16x1xf32>
    %3 = vector.extract_strided_slice %0 {offsets = [0, 0, 14], sizes = [8, 16, 1], strides = [1, 1, 1]} : vector<8x16x16xf32> to vector<8x16x1xf32>
    %4 = vector.extract_strided_slice %0 {offsets = [0, 0, 13], sizes = [8, 16, 1], strides = [1, 1, 1]} : vector<8x16x16xf32> to vector<8x16x1xf32>
    %5 = tpu.concatenate %1, %2, %0, %3, %4 in 2 : vector<8x16x1xf32>, vector<8x16x1xf32>, vector<8x16x16xf32>, vector<8x16x1xf32>, vector<8x16x1xf32> -> vector<8x16x20xf32>
    %6 = vector.extract_strided_slice %5 {offsets = [0, 0, 0], sizes = [8, 16, 16], strides = [1, 1, 1]} : vector<8x16x20xf32> to vector<8x16x16xf32>
    %7 = vector.extract_strided_slice %5 {offsets = [0, 0, 1], sizes = [8, 16, 16], strides = [1, 1, 1]} : vector<8x16x20xf32> to vector<8x16x16xf32>
    %8 = vector.extract_strided_slice %5 {offsets = [0, 0, 2], sizes = [8, 16, 16], strides = [1, 1, 1]} : vector<8x16x20xf32> to vector<8x16x16xf32>
    %9 = vector.extract_strided_slice %5 {offsets = [0, 0, 3], sizes = [8, 16, 16], strides = [1, 1, 1]} : vector<8x16x20xf32> to vector<8x16x16xf32>
    %10 = vector.extract_strided_slice %5 {offsets = [0, 0, 4], sizes = [8, 16, 16], strides = [1, 1, 1]} : vector<8x16x20xf32> to vector<8x16x16xf32>
    %11 = arith.addf %6, %10 : vector<8x16x16xf32>
    %cst = arith.constant 0.054488685 : f32
    %12 = vector.broadcast %cst : f32 to vector<8x16x16xf32>
    %13 = arith.mulf %12, %11 : vector<8x16x16xf32>
    %14 = arith.addf %7, %9 : vector<8x16x16xf32>
    %cst_2 = arith.constant 0.244201347 : f32
    %15 = vector.broadcast %cst_2 : f32 to vector<8x16x16xf32>
    %16 = arith.mulf %15, %14 : vector<8x16x16xf32>
    %cst_3 = arith.constant 0.402619958 : f32
    %17 = vector.broadcast %cst_3 : f32 to vector<8x16x16xf32>
    %18 = arith.mulf %17, %8 : vector<8x16x16xf32>
    %19 = arith.addf %13, %16 : vector<8x16x16xf32>
    %20 = arith.addf %19, %18 : vector<8x16x16xf32>
    %21 = vector.extract_strided_slice %20 {offsets = [0, 2, 0], sizes = [8, 1, 16], strides = [1, 1, 1]} : vector<8x16x16xf32> to vector<8x1x16xf32>
    %22 = vector.extract_strided_slice %20 {offsets = [0, 1, 0], sizes = [8, 1, 16], strides = [1, 1, 1]} : vector<8x16x16xf32> to vector<8x1x16xf32>
    %23 = vector.extract_strided_slice %20 {offsets = [0, 14, 0], sizes = [8, 1, 16], strides = [1, 1, 1]} : vector<8x16x16xf32> to vector<8x1x16xf32>
    %24 = vector.extract_strided_slice %20 {offsets = [0, 13, 0], sizes = [8, 1, 16], strides = [1, 1, 1]} : vector<8x16x16xf32> to vector<8x1x16xf32>
    %25 = tpu.concatenate %21, %22, %20, %23, %24 in 1 : vector<8x1x16xf32>, vector<8x1x16xf32>, vector<8x16x16xf32>, vector<8x1x16xf32>, vector<8x1x16xf32> -> vector<8x20x16xf32>
    %26 = vector.extract_strided_slice %25 {offsets = [0, 0, 0], sizes = [8, 16, 16], strides = [1, 1, 1]} : vector<8x20x16xf32> to vector<8x16x16xf32>
    %27 = vector.extract_strided_slice %25 {offsets = [0, 1, 0], sizes = [8, 16, 16], strides = [1, 1, 1]} : vector<8x20x16xf32> to vector<8x16x16xf32>
    %28 = vector.extract_strided_slice %25 {offsets = [0, 2, 0], sizes = [8, 16, 16], strides = [1, 1, 1]} : vector<8x20x16xf32> to vector<8x16x16xf32>
    %29 = vector.extract_strided_slice %25 {offsets = [0, 3, 0], sizes = [8, 16, 16], strides = [1, 1, 1]} : vector<8x20x16xf32> to vector<8x16x16xf32>
    %30 = vector.extract_strided_slice %25 {offsets = [0, 4, 0], sizes = [8, 16, 16], strides = [1, 1, 1]} : vector<8x20x16xf32> to vector<8x16x16xf32>
    %31 = arith.addf %26, %30 : vector<8x16x16xf32>
    %cst_4 = arith.constant 0.054488685 : f32
    %32 = vector.broadcast %cst_4 : f32 to vector<8x16x16xf32>
    %33 = arith.mulf %32, %31 : vector<8x16x16xf32>
    %34 = arith.addf %27, %29 : vector<8x16x16xf32>
    %cst_5 = arith.constant 0.244201347 : f32
    %35 = vector.broadcast %cst_5 : f32 to vector<8x16x16xf32>
    %36 = arith.mulf %35, %34 : vector<8x16x16xf32>
    %cst_6 = arith.constant 0.402619958 : f32
    %37 = vector.broadcast %cst_6 : f32 to vector<8x16x16xf32>
    %38 = arith.mulf %37, %28 : vector<8x16x16xf32>
    %39 = arith.addf %33, %36 : vector<8x16x16xf32>
    %40 = arith.addf %39, %38 : vector<8x16x16xf32>
    %c0_7 = arith.constant 0 : index
    %c0_8 = arith.constant 0 : index
    %c0_9 = arith.constant 0 : index
    %41 = vector.load %arg2[%c0_7, %c0_8, %c0_9] : memref<8x16x16xf32, #tpu.memory_space<vmem>>, vector<8x16x16xf32>
    tpu.vector_store %arg2[%c0_7, %c0_8, %c0_9], %40 {strides = array<i32>} : memref<8x16x16xf32, #tpu.memory_space<vmem>>, vector<8x16x16xf32>,
    return
  }
  func.func @transform_0(%arg0: i32) -> (i32, i32, i32) {
    %c0_i32 = arith.constant 0 : i32
    %c0_i32_0 = arith.constant 0 : i32
    %c0_i32_1 = arith.constant 0 : i32
    return %arg0, %c0_i32, %c0_i32_0 : i32, i32, i32
  }
  func.func @transform_1(%arg0: i32) -> (i32, i32, i32) {
    %c0_i32 = arith.constant 0 : i32
    %c0_i32_0 = arith.constant 0 : i32
    %c0_i32_1 = arith.constant 0 : i32
    return %arg0, %c0_i32, %c0_i32_0 : i32, i32, i32
  }
}

</mosaic_0001>

<llo_original>
// kernel: tpu_custom_call.1
$region0: #{tpu_custom_call.1}
  #allocation0 [shape = 'u32[]', space=smem, size = 0x4, offset = 0x4, fixed_abs, tag = 'smem constant byte address 0x4 - core index']
  #allocation1 [shape = 'u32[144,128]{1,0:T(1,128)}', space=vmem, size = 0x12000, scoped, tag = 'internal scratch']
  %s0 = inlined_call_operand.hbm [shape: f32[8,16,16], index: 0, kind: input, shape index: {}]
  %s1 = inlined_call_operand.hbm [shape: f32[8,16,16], index: 1, kind: output, shape index: {}]
  %s2 = sld [smem:[#allocation0]]
  $region18: #{tpu_custom_call.1} parent=0
    _
  %s4 = ssub.s32 1, %s2
  %s5 = scalar_select 0, %s4, %s2
  $region1: #{tpu_custom_call.1} parent=0
    #allocation2 [shape = 'u8[65536]{0}', space=vmem, size = 0x10000, scoped, tag = 'input window, operand 0, single buffered']
    #allocation3 [shape = 's32[1]{0}', space=sflag, size = 0x4, scoped, tag = 'scoped memory for tpu_custom_call.1']
    #allocation4 [shape = 's32[1]{0}', space=sflag, size = 0x4, scoped, tag = 'scoped memory for tpu_custom_call.1']
    #allocation5 [shape = 'u8[65536]{0}', space=vmem, size = 0x10000, scoped, tag = 'output window, operand 0, single buffered']
    %6 = vsyncpa [#allocation3], 0
    %7 = vsyncpa [#allocation4], 0
    // Predicated region
    $region2: #{tpu_custom_call.1} parent=1 // pred_check
      _
    $region3: #{tpu_custom_call.1} parent=1 // pred_check_branch
      %9 = sbr.rel (0) target = $region5
    $region4: #{tpu_custom_call.1} parent=1 // pred_region
      %s11 = ssub.s32 2048, 2048
      %12 = vsyncadd [#allocation3], %s11
      %s13 = sshll.u32 [#allocation2], 4
      %s14 = int_to_ptr.vmem [resolvable:$true] %s13
      %19 = dma.hbm_to_vmem [thread:$0]  %s0, 2048, %s14, [#allocation3], 128, 128, 8
    $region5: #{tpu_custom_call.1} parent=1 // pred_fallthru
      _
    // Predicated region
    $region6: #{tpu_custom_call.1} parent=1 // pred_check
      _
    $region7: #{tpu_custom_call.1} parent=1 // pred_check_branch
      %21 = sbr.rel (0) target = $region9
    $region8: #{tpu_custom_call.1} parent=1 // pred_region
      %22 = dma.done [#allocation3], 2048
    $region9: #{tpu_custom_call.1} parent=1 // pred_fallthru
      _
    %v23 = vld [vmem:[#allocation2] sm:$0xff]
    %v24 = vld [vmem:[#allocation2 + $0x8] sm:$0xff]
    %v25 = vld [vmem:[#allocation2 + $0x10] sm:$0xff]
    %v26 = vld [vmem:[#allocation2 + $0x18] sm:$0xff]
    %v27 = vld [vmem:[#allocation2 + $0x20] sm:$0xff]
    %v28 = vld [vmem:[#allocation2 + $0x28] sm:$0xff]
    %v29 = vld [vmem:[#allocation2 + $0x30] sm:$0xff]
    %v30 = vld [vmem:[#allocation2 + $0x38] sm:$0xff]
    %v31 = vld [vmem:[#allocation2 + $0x40] sm:$0xff]
    %v32 = vld [vmem:[#allocation2 + $0x48] sm:$0xff]
    %v33 = vld [vmem:[#allocation2 + $0x50] sm:$0xff]
    %v34 = vld [vmem:[#allocation2 + $0x58] sm:$0xff]
    %v35 = vld [vmem:[#allocation2 + $0x60] sm:$0xff]
    %v36 = vld [vmem:[#allocation2 + $0x68] sm:$0xff]
    %v37 = vld [vmem:[#allocation2 + $0x70] sm:$0xff]
    %v38 = vld [vmem:[#allocation2 + $0x78] sm:$0xff]
    %55 = vrot.lane.b32.xlu0 %v23, 126
    %v56 = vpop.permute.xlu0 %55
    %57 = vrot.lane.b32.xlu0 %v24, 126
    %v58 = vpop.permute.xlu0 %57
    %59 = vrot.lane.b32.xlu0 %v25, 126
    %v60 = vpop.permute.xlu0 %59
    %61 = vrot.lane.b32.xlu0 %v26, 126
    %v62 = vpop.permute.xlu0 %61
    %63 = vrot.lane.b32.xlu0 %v27, 126
    %v64 = vpop.permute.xlu0 %63
    %65 = vrot.lane.b32.xlu0 %v28, 126
    %v66 = vpop.permute.xlu0 %65
    %67 = vrot.lane.b32.xlu0 %v29, 126
    %v68 = vpop.permute.xlu0 %67
    %69 = vrot.lane.b32.xlu0 %v30, 126
    %v70 = vpop.permute.xlu0 %69
    %71 = vrot.lane.b32.xlu0 %v31, 126
    %v72 = vpop.permute.xlu0 %71
    %73 = vrot.lane.b32.xlu0 %v32, 126
    %v74 = vpop.permute.xlu0 %73
    %75 = vrot.lane.b32.xlu0 %v33, 126
    %v76 = vpop.permute.xlu0 %75
    %77 = vrot.lane.b32.xlu0 %v34, 126
    %v78 = vpop.permute.xlu0 %77
    %79 = vrot.lane.b32.xlu0 %v35, 126
    %v80 = vpop.permute.xlu0 %79
    %81 = vrot.lane.b32.xlu0 %v36, 126
    %v82 = vpop.permute.xlu0 %81
    %83 = vrot.lane.b32.xlu0 %v37, 126
    %v84 = vpop.permute.xlu0 %83
    %85 = vrot.lane.b32.xlu0 %v38, 126
    %v86 = vpop.permute.xlu0 %85
    %103 = vrot.lane.b32.xlu0 %v23, 2
    %v104 = vpop.permute.xlu0 %103
    %105 = vrot.lane.b32.xlu0 %v24, 2
    %v106 = vpop.permute.xlu0 %105
    %107 = vrot.lane.b32.xlu0 %v25, 2
    %v108 = vpop.permute.xlu0 %107
    %109 = vrot.lane.b32.xlu0 %v26, 2
    %v110 = vpop.permute.xlu0 %109
    %111 = vrot.lane.b32.xlu0 %v27, 2
    %v112 = vpop.permute.xlu0 %111
    %113 = vrot.lane.b32.xlu0 %v28, 2
    %v114 = vpop.permute.xlu0 %113
    %115 = vrot.lane.b32.xlu0 %v29, 2
    %v116 = vpop.permute.xlu0 %115
    %117 = vrot.lane.b32.xlu0 %v30, 2
    %v118 = vpop.permute.xlu0 %117
    %119 = vrot.lane.b32.xlu0 %v31, 2
    %v120 = vpop.permute.xlu0 %119
    %121 = vrot.lane.b32.xlu0 %v32, 2
    %v122 = vpop.permute.xlu0 %121
    %123 = vrot.lane.b32.xlu0 %v33, 2
    %v124 = vpop.permute.xlu0 %123
    %125 = vrot.lane.b32.xlu0 %v34, 2
    %v126 = vpop.permute.xlu0 %125
    %127 = vrot.lane.b32.xlu0 %v35, 2
    %v128 = vpop.permute.xlu0 %127
    %129 = vrot.lane.b32.xlu0 %v36, 2
    %v130 = vpop.permute.xlu0 %129
    %131 = vrot.lane.b32.xlu0 %v37, 2
    %v132 = vpop.permute.xlu0 %131
    %133 = vrot.lane.b32.xlu0 %v38, 2
    %v134 = vpop.permute.xlu0 %133
    %151 = vrot.lane.b32.xlu0 %v23, 4
    %v152 = vpop.permute.xlu0 %151
    %153 = vrot.lane.b32.xlu0 %v24, 4
    %v154 = vpop.permute.xlu0 %153
    %155 = vrot.lane.b32.xlu0 %v25, 4
    %v156 = vpop.permute.xlu0 %155
    %157 = vrot.lane.b32.xlu0 %v26, 4
    %v158 = vpop.permute.xlu0 %157
    %159 = vrot.lane.b32.xlu0 %v27, 4
    %v160 = vpop.permute.xlu0 %159
    %161 = vrot.lane.b32.xlu0 %v28, 4
    %v162 = vpop.permute.xlu0 %161
    %163 = vrot.lane.b32.xlu0 %v29, 4
    %v164 = vpop.permute.xlu0 %163
    %165 = vrot.lane.b32.xlu0 %v30, 4
    %v166 = vpop.permute.xlu0 %165
    %167 = vrot.lane.b32.xlu0 %v31, 4
    %v168 = vpop.permute.xlu0 %167
    %169 = vrot.lane.b32.xlu0 %v32, 4
    %v170 = vpop.permute.xlu0 %169
    %171 = vrot.lane.b32.xlu0 %v33, 4
    %v172 = vpop.permute.xlu0 %171
    %173 = vrot.lane.b32.xlu0 %v34, 4
    %v174 = vpop.permute.xlu0 %173
    %175 = vrot.lane.b32.xlu0 %v35, 4
    %v176 = vpop.permute.xlu0 %175
    %177 = vrot.lane.b32.xlu0 %v36, 4
    %v178 = vpop.permute.xlu0 %177
    %179 = vrot.lane.b32.xlu0 %v37, 4
    %v180 = vpop.permute.xlu0 %179
    %181 = vrot.lane.b32.xlu0 %v38, 4
    %v182 = vpop.permute.xlu0 %181
    %199 = vrot.lane.b32.xlu0 %v23, 6
    %v200 = vpop.permute.xlu0 %199
    %201 = vrot.lane.b32.xlu0 %v24, 6
    %v202 = vpop.permute.xlu0 %201
    %203 = vrot.lane.b32.xlu0 %v25, 6
    %v204 = vpop.permute.xlu0 %203
    %205 = vrot.lane.b32.xlu0 %v26, 6
    %v206 = vpop.permute.xlu0 %205
    %207 = vrot.lane.b32.xlu0 %v27, 6
    %v208 = vpop.permute.xlu0 %207
    %209 = vrot.lane.b32.xlu0 %v28, 6
    %v210 = vpop.permute.xlu0 %209
    %211 = vrot.lane.b32.xlu0 %v29, 6
    %v212 = vpop.permute.xlu0 %211
    %213 = vrot.lane.b32.xlu0 %v30, 6
    %v214 = vpop.permute.xlu0 %213
    %215 = vrot.lane.b32.xlu0 %v31, 6
    %v216 = vpop.permute.xlu0 %215
    %217 = vrot.lane.b32.xlu0 %v32, 6
    %v218 = vpop.permute.xlu0 %217
    %219 = vrot.lane.b32.xlu0 %v33, 6
    %v220 = vpop.permute.xlu0 %219
    %221 = vrot.lane.b32.xlu0 %v34, 6
    %v222 = vpop.permute.xlu0 %221
    %223 = vrot.lane.b32.xlu0 %v35, 6
    %v224 = vpop.permute.xlu0 %223
    %225 = vrot.lane.b32.xlu0 %v36, 6
    %v226 = vpop.permute.xlu0 %225
    %227 = vrot.lane.b32.xlu0 %v37, 6
    %v228 = vpop.permute.xlu0 %227
    %229 = vrot.lane.b32.xlu0 %v38, 6
    %v230 = vpop.permute.xlu0 %229
    %vm247 = vcmask 7168
    %v248 = vsel %vm247, %v56, %v23
    %v249 = vsel %vm247, %v58, %v24
    %v250 = vsel %vm247, %v60, %v25
    %v251 = vsel %vm247, %v62, %v26
    %v252 = vsel %vm247, %v64, %v27
    %v253 = vsel %vm247, %v66, %v28
    %v254 = vsel %vm247, %v68, %v29
    %v255 = vsel %vm247, %v70, %v30
    %v256 = vsel %vm247, %v72, %v31
    %v257 = vsel %vm247, %v74, %v32
    %v258 = vsel %vm247, %v76, %v33
    %v259 = vsel %vm247, %v78, %v34
    %v260 = vsel %vm247, %v80, %v35
    %v261 = vsel %vm247, %v82, %v36
    %v262 = vsel %vm247, %v84, %v37
    %v263 = vsel %vm247, %v86, %v38
    %vm264 = vcmask 15360
    %v265 = vsel %vm264, %v248, %v104
    %v266 = vsel %vm264, %v249, %v106
    %v267 = vsel %vm264, %v250, %v108
    %v268 = vsel %vm264, %v251, %v110
    %v269 = vsel %vm264, %v252, %v112
    %v270 = vsel %vm264, %v253, %v114
    %v271 = vsel %vm264, %v254, %v116
    %v272 = vsel %vm264, %v255, %v118
    %v273 = vsel %vm264, %v256, %v120
    %v274 = vsel %vm264, %v257, %v122
    %v275 = vsel %vm264, %v258, %v124
    %v276 = vsel %vm264, %v259, %v126
    %v277 = vsel %vm264, %v260, %v128
    %v278 = vsel %vm264, %v261, %v130
    %v279 = vsel %vm264, %v262, %v132
    %v280 = vsel %vm264, %v263, %v134
    %vm281 = vcmask 146432
    %v282 = vsel %vm281, %v265, %v152
    %v283 = vsel %vm281, %v266, %v154
    %v284 = vsel %vm281, %v267, %v156
    %v285 = vsel %vm281, %v268, %v158
    %v286 = vsel %vm281, %v269, %v160
    %v287 = vsel %vm281, %v270, %v162
    %v288 = vsel %vm281, %v271, %v164
    %v289 = vsel %vm281, %v272, %v166
    %v290 = vsel %vm281, %v273, %v168
    %v291 = vsel %vm281, %v274, %v170
    %v292 = vsel %vm281, %v275, %v172
    %v293 = vsel %vm281, %v276, %v174
    %v294 = vsel %vm281, %v277, %v176
    %v295 = vsel %vm281, %v278, %v178
    %v296 = vsel %vm281, %v279, %v180
    %v297 = vsel %vm281, %v280, %v182
    %vm298 = vcmask 154624
    %v299 = vsel %vm298, %v282, %v200
    %v300 = vsel %vm298, %v283, %v202
    %v301 = vsel %vm298, %v284, %v204
    %v302 = vsel %vm298, %v285, %v206
    %v303 = vsel %vm298, %v286, %v208
    %v304 = vsel %vm298, %v287, %v210
    %v305 = vsel %vm298, %v288, %v212
    %v306 = vsel %vm298, %v289, %v214
    %v307 = vsel %vm298, %v290, %v216
    %v308 = vsel %vm298, %v291, %v218
    %v309 = vsel %vm298, %v292, %v220
    %v310 = vsel %vm298, %v293, %v222
    %v311 = vsel %vm298, %v294, %v224
    %v312 = vsel %vm298, %v295, %v226
    %v313 = vsel %vm298, %v296, %v228
    %v314 = vsel %vm298, %v297, %v230
    %331 = vrot.lane.b32.xlu0 %v299, 124
    %v332 = vpop.permute.xlu0 %331
    %333 = vrot.lane.b32.xlu0 %v300, 124
    %v334 = vpop.permute.xlu0 %333
    %335 = vrot.lane.b32.xlu0 %v301, 124
    %v336 = vpop.permute.xlu0 %335
    %337 = vrot.lane.b32.xlu0 %v302, 124
    %v338 = vpop.permute.xlu0 %337
    %339 = vrot.lane.b32.xlu0 %v303, 124
    %v340 = vpop.permute.xlu0 %339
    %341 = vrot.lane.b32.xlu0 %v304, 124
    %v342 = vpop.permute.xlu0 %341
    %343 = vrot.lane.b32.xlu0 %v305, 124
    %v344 = vpop.permute.xlu0 %343
    %345 = vrot.lane.b32.xlu0 %v306, 124
    %v346 = vpop.permute.xlu0 %345
    %347 = vrot.lane.b32.xlu0 %v307, 124
    %v348 = vpop.permute.xlu0 %347
    %349 = vrot.lane.b32.xlu0 %v308, 124
    %v350 = vpop.permute.xlu0 %349
    %351 = vrot.lane.b32.xlu0 %v309, 124
    %v352 = vpop.permute.xlu0 %351
    %353 = vrot.lane.b32.xlu0 %v310, 124
    %v354 = vpop.permute.xlu0 %353
    %355 = vrot.lane.b32.xlu0 %v311, 124
    %v356 = vpop.permute.xlu0 %355
    %357 = vrot.lane.b32.xlu0 %v312, 124
    %v358 = vpop.permute.xlu0 %357
    %359 = vrot.lane.b32.xlu0 %v313, 124
    %v360 = vpop.permute.xlu0 %359
    %361 = vrot.lane.b32.xlu0 %v314, 124
    %v362 = vpop.permute.xlu0 %361
    %v379 = vadd.f32 %v299, %v332
    %v380 = vadd.f32 %v300, %v334
    %v381 = vadd.f32 %v301, %v336
    %v382 = vadd.f32 %v302, %v338
    %v383 = vadd.f32 %v303, %v340
    %v384 = vadd.f32 %v304, %v342
    %v385 = vadd.f32 %v305, %v344
    %v386 = vadd.f32 %v306, %v346
    %v387 = vadd.f32 %v307, %v348
    %v388 = vadd.f32 %v308, %v350
    %v389 = vadd.f32 %v309, %v352
    %v390 = vadd.f32 %v310, %v354
    %v391 = vadd.f32 %v311, %v356
    %v392 = vadd.f32 %v312, %v358
    %v393 = vadd.f32 %v313, %v360
    %v394 = vadd.f32 %v314, %v362
    %v395 = vmul.f32 %v379, 0.054488685
    %v396 = vmul.f32 %v380, 0.054488685
    %v397 = vmul.f32 %v381, 0.054488685
    %v398 = vmul.f32 %v382, 0.054488685
    %v399 = vmul.f32 %v383, 0.054488685
    %v400 = vmul.f32 %v384, 0.054488685
    %v401 = vmul.f32 %v385, 0.054488685
    %v402 = vmul.f32 %v386, 0.054488685
    %v403 = vmul.f32 %v387, 0.054488685
    %v404 = vmul.f32 %v388, 0.054488685
    %v405 = vmul.f32 %v389, 0.054488685
    %v406 = vmul.f32 %v390, 0.054488685
    %v407 = vmul.f32 %v391, 0.054488685
    %v408 = vmul.f32 %v392, 0.054488685
    %v409 = vmul.f32 %v393, 0.054488685
    %v410 = vmul.f32 %v394, 0.054488685
    %411 = vrot.lane.b32.xlu0 %v299, 126
    %v412 = vpop.permute.xlu0 %411
    %413 = vrot.lane.b32.xlu0 %v300, 126
    %v414 = vpop.permute.xlu0 %413
    %415 = vrot.lane.b32.xlu0 %v301, 126
    %v416 = vpop.permute.xlu0 %415
    %417 = vrot.lane.b32.xlu0 %v302, 126
    %v418 = vpop.permute.xlu0 %417
    %419 = vrot.lane.b32.xlu0 %v303, 126
    %v420 = vpop.permute.xlu0 %419
    %421 = vrot.lane.b32.xlu0 %v304, 126
    %v422 = vpop.permute.xlu0 %421
    %423 = vrot.lane.b32.xlu0 %v305, 126
    %v424 = vpop.permute.xlu0 %423
    %425 = vrot.lane.b32.xlu0 %v306, 126
    %v426 = vpop.permute.xlu0 %425
    %427 = vrot.lane.b32.xlu0 %v307, 126
    %v428 = vpop.permute.xlu0 %427
    %429 = vrot.lane.b32.xlu0 %v308, 126
    %v430 = vpop.permute.xlu0 %429
    %431 = vrot.lane.b32.xlu0 %v309, 126
    %v432 = vpop.permute.xlu0 %431
    %433 = vrot.lane.b32.xlu0 %v310, 126
    %v434 = vpop.permute.xlu0 %433
    %435 = vrot.lane.b32.xlu0 %v311, 126
    %v436 = vpop.permute.xlu0 %435
    %437 = vrot.lane.b32.xlu0 %v312, 126
    %v438 = vpop.permute.xlu0 %437
    %439 = vrot.lane.b32.xlu0 %v313, 126
    %v440 = vpop.permute.xlu0 %439
    %441 = vrot.lane.b32.xlu0 %v314, 126
    %v442 = vpop.permute.xlu0 %441
    %v459 = vadd.f32 %v299, %v412
    %v460 = vadd.f32 %v300, %v414
    %v461 = vadd.f32 %v301, %v416
    %v462 = vadd.f32 %v302, %v418
    %v463 = vadd.f32 %v303, %v420
    %v464 = vadd.f32 %v304, %v422
    %v465 = vadd.f32 %v305, %v424
    %v466 = vadd.f32 %v306, %v426
    %v467 = vadd.f32 %v307, %v428
    %v468 = vadd.f32 %v308, %v430
    %v469 = vadd.f32 %v309, %v432
    %v470 = vadd.f32 %v310, %v434
    %v471 = vadd.f32 %v311, %v436
    %v472 = vadd.f32 %v312, %v438
    %v473 = vadd.f32 %v313, %v440
    %v474 = vadd.f32 %v314, %v442
    %v475 = vmul.f32 %v459, 0.24420135
    %v476 = vmul.f32 %v460, 0.24420135
    %v477 = vmul.f32 %v461, 0.24420135
    %v478 = vmul.f32 %v462, 0.24420135
    %v479 = vmul.f32 %v463, 0.24420135
    %v480 = vmul.f32 %v464, 0.24420135
    %v481 = vmul.f32 %v465, 0.24420135
    %v482 = vmul.f32 %v466, 0.24420135
    %v483 = vmul.f32 %v467, 0.24420135
    %v484 = vmul.f32 %v468, 0.24420135
    %v485 = vmul.f32 %v469, 0.24420135
    %v486 = vmul.f32 %v470, 0.24420135
    %v487 = vmul.f32 %v471, 0.24420135
    %v488 = vmul.f32 %v472, 0.24420135
    %v489 = vmul.f32 %v473, 0.24420135
    %v490 = vmul.f32 %v474, 0.24420135
    %v491 = vmul.f32 %v299, 0.40261996
    %v492 = vmul.f32 %v300, 0.40261996
    %v493 = vmul.f32 %v301, 0.40261996
    %v494 = vmul.f32 %v302, 0.40261996
    %v495 = vmul.f32 %v303, 0.40261996
    %v496 = vmul.f32 %v304, 0.40261996
    %v497 = vmul.f32 %v305, 0.40261996
    %v498 = vmul.f32 %v306, 0.40261996
    %v499 = vmul.f32 %v307, 0.40261996
    %v500 = vmul.f32 %v308, 0.40261996
    %v501 = vmul.f32 %v309, 0.40261996
    %v502 = vmul.f32 %v310, 0.40261996
    %v503 = vmul.f32 %v311, 0.40261996
    %v504 = vmul.f32 %v312, 0.40261996
    %v505 = vmul.f32 %v313, 0.40261996
    %v506 = vmul.f32 %v314, 0.40261996
    %523 = vrot.lane.b32.xlu0 %v475, 127
    %v524 = vpop.permute.xlu0 %523
    %525 = vrot.lane.b32.xlu0 %v476, 127
    %v526 = vpop.permute.xlu0 %525
    %527 = vrot.lane.b32.xlu0 %v477, 127
    %v528 = vpop.permute.xlu0 %527
    %529 = vrot.lane.b32.xlu0 %v478, 127
    %v530 = vpop.permute.xlu0 %529
    %531 = vrot.lane.b32.xlu0 %v479, 127
    %v532 = vpop.permute.xlu0 %531
    %533 = vrot.lane.b32.xlu0 %v480, 127
    %v534 = vpop.permute.xlu0 %533
    %535 = vrot.lane.b32.xlu0 %v481, 127
    %v536 = vpop.permute.xlu0 %535
    %537 = vrot.lane.b32.xlu0 %v482, 127
    %v538 = vpop.permute.xlu0 %537
    %539 = vrot.lane.b32.xlu0 %v483, 127
    %v540 = vpop.permute.xlu0 %539
    %541 = vrot.lane.b32.xlu0 %v484, 127
    %v542 = vpop.permute.xlu0 %541
    %543 = vrot.lane.b32.xlu0 %v485, 127
    %v544 = vpop.permute.xlu0 %543
    %545 = vrot.lane.b32.xlu0 %v486, 127
    %v546 = vpop.permute.xlu0 %545
    %547 = vrot.lane.b32.xlu0 %v487, 127
    %v548 = vpop.permute.xlu0 %547
    %549 = vrot.lane.b32.xlu0 %v488, 127
    %v550 = vpop.permute.xlu0 %549
    %551 = vrot.lane.b32.xlu0 %v489, 127
    %v552 = vpop.permute.xlu0 %551
    %553 = vrot.lane.b32.xlu0 %v490, 127
    %v554 = vpop.permute.xlu0 %553
    %v571 = vadd.f32 %v395, %v524
    %v572 = vadd.f32 %v396, %v526
    %v573 = vadd.f32 %v397, %v528
    %v574 = vadd.f32 %v398, %v530
    %v575 = vadd.f32 %v399, %v532
    %v576 = vadd.f32 %v400, %v534
    %v577 = vadd.f32 %v401, %v536
    %v578 = vadd.f32 %v402, %v538
    %v579 = vadd.f32 %v403, %v540
    %v580 = vadd.f32 %v404, %v542
    %v581 = vadd.f32 %v405, %v544
    %v582 = vadd.f32 %v406, %v546
    %v583 = vadd.f32 %v407, %v548
    %v584 = vadd.f32 %v408, %v550
    %v585 = vadd.f32 %v409, %v552
    %v586 = vadd.f32 %v410, %v554
    %603 = vrot.lane.b32.xlu0 %v491, 126
    %v604 = vpop.permute.xlu0 %603
    %605 = vrot.lane.b32.xlu0 %v492, 126
    %v606 = vpop.permute.xlu0 %605
    %607 = vrot.lane.b32.xlu0 %v493, 126
    %v608 = vpop.permute.xlu0 %607
    %609 = vrot.lane.b32.xlu0 %v494, 126
    %v610 = vpop.permute.xlu0 %609
    %611 = vrot.lane.b32.xlu0 %v495, 126
    %v612 = vpop.permute.xlu0 %611
    %613 = vrot.lane.b32.xlu0 %v496, 126
    %v614 = vpop.permute.xlu0 %613
    %615 = vrot.lane.b32.xlu0 %v497, 126
    %v616 = vpop.permute.xlu0 %615
    %617 = vrot.lane.b32.xlu0 %v498, 126
    %v618 = vpop.permute.xlu0 %617
    %619 = vrot.lane.b32.xlu0 %v499, 126
    %v620 = vpop.permute.xlu0 %619
    %621 = vrot.lane.b32.xlu0 %v500, 126
    %v622 = vpop.permute.xlu0 %621
    %623 = vrot.lane.b32.xlu0 %v501, 126
    %v624 = vpop.permute.xlu0 %623
    %625 = vrot.lane.b32.xlu0 %v502, 126
    %v626 = vpop.permute.xlu0 %625
    %627 = vrot.lane.b32.xlu0 %v503, 126
    %v628 = vpop.permute.xlu0 %627
    %629 = vrot.lane.b32.xlu0 %v504, 126
    %v630 = vpop.permute.xlu0 %629
    %631 = vrot.lane.b32.xlu0 %v505, 126
    %v632 = vpop.permute.xlu0 %631
    %633 = vrot.lane.b32.xlu0 %v506, 126
    %v634 = vpop.permute.xlu0 %633
    %v651 = vadd.f32 %v571, %v604
    %v652 = vadd.f32 %v572, %v606
    %v653 = vadd.f32 %v573, %v608
    %v654 = vadd.f32 %v574, %v610
    %v655 = vadd.f32 %v575, %v612
    %v656 = vadd.f32 %v576, %v614
    %v657 = vadd.f32 %v577, %v616
    %v658 = vadd.f32 %v578, %v618
    %v659 = vadd.f32 %v579, %v620
    %v660 = vadd.f32 %v580, %v622
    %v661 = vadd.f32 %v581, %v624
    %v662 = vadd.f32 %v582, %v626
    %v663 = vadd.f32 %v583, %v628
    %v664 = vadd.f32 %v584, %v630
    %v665 = vadd.f32 %v585, %v632
    %v666 = vadd.f32 %v586, %v634
    %v675 = vrot.slane %v651, 2
    %v676 = vrot.slane %v653, 2
    %v677 = vrot.slane %v655, 2
    %v678 = vrot.slane %v657, 2
    %v679 = vrot.slane %v659, 2
    %v680 = vrot.slane %v661, 2
    %v681 = vrot.slane %v663, 2
    %v682 = vrot.slane %v665, 2
    %vm699 = vcmask 1041408
    %v700 = vrot.slane %v651, 6
    %v701 = vrot.slane %v652, 6
    %v702 = vsel %vm699, %v700, %v701
    %v703 = vrot.slane %v653, 6
    %v704 = vrot.slane %v654, 6
    %v705 = vsel %vm699, %v703, %v704
    %v706 = vrot.slane %v655, 6
    %v707 = vrot.slane %v656, 6
    %v708 = vsel %vm699, %v706, %v707
    %v709 = vrot.slane %v657, 6
    %v710 = vrot.slane %v658, 6
    %v711 = vsel %vm699, %v709, %v710
    %v712 = vrot.slane %v659, 6
    %v713 = vrot.slane %v660, 6
    %v714 = vsel %vm699, %v712, %v713
    %v715 = vrot.slane %v661, 6
    %v716 = vrot.slane %v662, 6
    %v717 = vsel %vm699, %v715, %v716
    %v718 = vrot.slane %v663, 6
    %v719 = vrot.slane %v664, 6
    %v720 = vsel %vm699, %v718, %v719
    %v721 = vrot.slane %v665, 6
    %v722 = vrot.slane %v666, 6
    %v723 = vsel %vm699, %v721, %v722
    %v748 = vrot.slane %v652, 4
    %v749 = vrot.slane %v654, 4
    %v750 = vrot.slane %v656, 4
    %v751 = vrot.slane %v658, 4
    %v752 = vrot.slane %v660, 4
    %v753 = vrot.slane %v662, 4
    %v754 = vrot.slane %v664, 4
    %v755 = vrot.slane %v666, 4
    %v764 = vrot.slane %v652, 2
    %v765 = vrot.slane %v654, 2
    %v766 = vrot.slane %v656, 2
    %v767 = vrot.slane %v658, 2
    %v768 = vrot.slane %v660, 2
    %v769 = vrot.slane %v662, 2
    %v770 = vrot.slane %v664, 2
    %v771 = vrot.slane %v666, 2
    %vm780 = vcmask 1040384
    %v781 = vsel %vm780, %v675, %v651
    %v782 = vsel %vm780, %v676, %v653
    %v783 = vsel %vm780, %v677, %v655
    %v784 = vsel %vm780, %v678, %v657
    %v785 = vsel %vm780, %v679, %v659
    %v786 = vsel %vm780, %v680, %v661
    %v787 = vsel %vm780, %v681, %v663
    %v788 = vsel %vm780, %v682, %v665
    %v789 = vsel %vm699, %v781, %v700
    %v790 = vsel %vm699, %v782, %v703
    %v791 = vsel %vm699, %v783, %v706
    %v792 = vsel %vm699, %v784, %v709
    %v793 = vsel %vm699, %v785, %v712
    %v794 = vsel %vm699, %v786, %v715
    %v795 = vsel %vm699, %v787, %v718
    %v796 = vsel %vm699, %v788, %v721
    %v797 = vsel %vm699, %v701, %v748
    %v798 = vsel %vm699, %v704, %v749
    %v799 = vsel %vm699, %v707, %v750
    %v800 = vsel %vm699, %v710, %v751
    %v801 = vsel %vm699, %v713, %v752
    %v802 = vsel %vm699, %v716, %v753
    %v803 = vsel %vm699, %v719, %v754
    %v804 = vsel %vm699, %v722, %v755
    %vm805 = vcmask 1042432
    %v806 = vsel %vm805, %v797, %v764
    %v807 = vsel %vm805, %v798, %v765
    %v808 = vsel %vm805, %v799, %v766
    %v809 = vsel %vm805, %v800, %v767
    %v810 = vsel %vm805, %v801, %v768
    %v811 = vsel %vm805, %v802, %v769
    %v812 = vsel %vm805, %v803, %v770
    %v813 = vsel %vm805, %v804, %v771
    %vm830 = vcmask 1043456
    %v831 = vrot.slane %v789, 4
    %v832 = vrot.slane %v702, 4
    %v833 = vsel %vm830, %v831, %v832
    %v834 = vrot.slane %v806, 4
    %v835 = vsel %vm830, %v832, %v834
    %v836 = vrot.slane %v790, 4
    %v837 = vrot.slane %v705, 4
    %v838 = vsel %vm830, %v836, %v837
    %v839 = vrot.slane %v807, 4
    %v840 = vsel %vm830, %v837, %v839
    %v841 = vrot.slane %v791, 4
    %v842 = vrot.slane %v708, 4
    %v843 = vsel %vm830, %v841, %v842
    %v844 = vrot.slane %v808, 4
    %v845 = vsel %vm830, %v842, %v844
    %v846 = vrot.slane %v792, 4
    %v847 = vrot.slane %v711, 4
    %v848 = vsel %vm830, %v846, %v847
    %v849 = vrot.slane %v809, 4
    %v850 = vsel %vm830, %v847, %v849
    %v851 = vrot.slane %v793, 4
    %v852 = vrot.slane %v714, 4
    %v853 = vsel %vm830, %v851, %v852
    %v854 = vrot.slane %v810, 4
    %v855 = vsel %vm830, %v852, %v854
    %v856 = vrot.slane %v794, 4
    %v857 = vrot.slane %v717, 4
    %v858 = vsel %vm830, %v856, %v857
    %v859 = vrot.slane %v811, 4
    %v860 = vsel %vm830, %v857, %v859
    %v861 = vrot.slane %v795, 4
    %v862 = vrot.slane %v720, 4
    %v863 = vsel %vm830, %v861, %v862
    %v864 = vrot.slane %v812, 4
    %v865 = vsel %vm830, %v862, %v864
    %v866 = vrot.slane %v796, 4
    %v867 = vrot.slane %v723, 4
    %v868 = vsel %vm830, %v866, %v867
    %v869 = vrot.slane %v813, 4
    %v870 = vsel %vm830, %v867, %v869
    %v887 = vadd.f32 %v789, %v833
    %v888 = vadd.f32 %v702, %v835
    %v889 = vadd.f32 %v790, %v838
    %v890 = vadd.f32 %v705, %v840
    %v891 = vadd.f32 %v791, %v843
    %v892 = vadd.f32 %v708, %v845
    %v893 = vadd.f32 %v792, %v848
    %v894 = vadd.f32 %v711, %v850
    %v895 = vadd.f32 %v793, %v853
    %v896 = vadd.f32 %v714, %v855
    %v897 = vadd.f32 %v794, %v858
    %v898 = vadd.f32 %v717, %v860
    %v899 = vadd.f32 %v795, %v863
    %v900 = vadd.f32 %v720, %v865
    %v901 = vadd.f32 %v796, %v868
    %v902 = vadd.f32 %v723, %v870
    %v903 = vmul.f32 %v887, 0.054488685
    %v904 = vmul.f32 %v888, 0.054488685
    %v905 = vmul.f32 %v889, 0.054488685
    %v906 = vmul.f32 %v890, 0.054488685
    %v907 = vmul.f32 %v891, 0.054488685
    %v908 = vmul.f32 %v892, 0.054488685
    %v909 = vmul.f32 %v893, 0.054488685
    %v910 = vmul.f32 %v894, 0.054488685
    %v911 = vmul.f32 %v895, 0.054488685
    %v912 = vmul.f32 %v896, 0.054488685
    %v913 = vmul.f32 %v897, 0.054488685
    %v914 = vmul.f32 %v898, 0.054488685
    %v915 = vmul.f32 %v899, 0.054488685
    %v916 = vmul.f32 %v900, 0.054488685
    %v917 = vmul.f32 %v901, 0.054488685
    %v918 = vmul.f32 %v902, 0.054488685
    %vm919 = vcmask 1045504
    %v920 = vrot.slane %v789, 2
    %v921 = vrot.slane %v702, 2
    %v922 = vsel %vm919, %v920, %v921
    %v923 = vrot.slane %v806, 2
    %v924 = vsel %vm919, %v921, %v923
    %v925 = vrot.slane %v790, 2
    %v926 = vrot.slane %v705, 2
    %v927 = vsel %vm919, %v925, %v926
    %v928 = vrot.slane %v807, 2
    %v929 = vsel %vm919, %v926, %v928
    %v930 = vrot.slane %v791, 2
    %v931 = vrot.slane %v708, 2
    %v932 = vsel %vm919, %v930, %v931
    %v933 = vrot.slane %v808, 2
    %v934 = vsel %vm919, %v931, %v933
    %v935 = vrot.slane %v792, 2
    %v936 = vrot.slane %v711, 2
    %v937 = vsel %vm919, %v935, %v936
    %v938 = vrot.slane %v809, 2
    %v939 = vsel %vm919, %v936, %v938
    %v940 = vrot.slane %v793, 2
    %v941 = vrot.slane %v714, 2
    %v942 = vsel %vm919, %v940, %v941
    %v943 = vrot.slane %v810, 2
    %v944 = vsel %vm919, %v941, %v943
    %v945 = vrot.slane %v794, 2
    %v946 = vrot.slane %v717, 2
    %v947 = vsel %vm919, %v945, %v946
    %v948 = vrot.slane %v811, 2
    %v949 = vsel %vm919, %v946, %v948
    %v950 = vrot.slane %v795, 2
    %v951 = vrot.slane %v720, 2
    %v952 = vsel %vm919, %v950, %v951
    %v953 = vrot.slane %v812, 2
    %v954 = vsel %vm919, %v951, %v953
    %v955 = vrot.slane %v796, 2
    %v956 = vrot.slane %v723, 2
    %v957 = vsel %vm919, %v955, %v956
    %v958 = vrot.slane %v813, 2
    %v959 = vsel %vm919, %v956, %v958
    %v984 = vadd.f32 %v789, %v922
    %v985 = vadd.f32 %v702, %v924
    %v986 = vadd.f32 %v806, %v923
    %v987 = vadd.f32 %v790, %v927
    %v988 = vadd.f32 %v705, %v929
    %v989 = vadd.f32 %v807, %v928
    %v990 = vadd.f32 %v791, %v932
    %v991 = vadd.f32 %v708, %v934
    %v992 = vadd.f32 %v808, %v933
    %v993 = vadd.f32 %v792, %v937
    %v994 = vadd.f32 %v711, %v939
    %v995 = vadd.f32 %v809, %v938
    %v996 = vadd.f32 %v793, %v942
    %v997 = vadd.f32 %v714, %v944
    %v998 = vadd.f32 %v810, %v943
    %v999 = vadd.f32 %v794, %v947
    %v1000 = vadd.f32 %v717, %v949
    %v1001 = vadd.f32 %v811, %v948
    %v1002 = vadd.f32 %v795, %v952
    %v1003 = vadd.f32 %v720, %v954
    %v1004 = vadd.f32 %v812, %v953
    %v1005 = vadd.f32 %v796, %v957
    %v1006 = vadd.f32 %v723, %v959
    %v1007 = vadd.f32 %v813, %v958
    %v1008 = vmul.f32 %v984, 0.24420135
    %v1009 = vmul.f32 %v985, 0.24420135
    %v1010 = vmul.f32 %v986, 0.24420135
    %v1011 = vmul.f32 %v987, 0.24420135
    %v1012 = vmul.f32 %v988, 0.24420135
    %v1013 = vmul.f32 %v989, 0.24420135
    %v1014 = vmul.f32 %v990, 0.24420135
    %v1015 = vmul.f32 %v991, 0.24420135
    %v1016 = vmul.f32 %v992, 0.24420135
    %v1017 = vmul.f32 %v993, 0.24420135
    %v1018 = vmul.f32 %v994, 0.24420135
    %v1019 = vmul.f32 %v995, 0.24420135
    %v1020 = vmul.f32 %v996, 0.24420135
    %v1021 = vmul.f32 %v997, 0.24420135
    %v1022 = vmul.f32 %v998, 0.24420135
    %v1023 = vmul.f32 %v999, 0.24420135
    %v1024 = vmul.f32 %v1000, 0.24420135
    %v1025 = vmul.f32 %v1001, 0.24420135
    %v1026 = vmul.f32 %v1002, 0.24420135
    %v1027 = vmul.f32 %v1003, 0.24420135
    %v1028 = vmul.f32 %v1004, 0.24420135
    %v1029 = vmul.f32 %v1005, 0.24420135
    %v1030 = vmul.f32 %v1006, 0.24420135
    %v1031 = vmul.f32 %v1007, 0.24420135
    %v1032 = vmul.f32 %v789, 0.40261996
    %v1033 = vmul.f32 %v702, 0.40261996
    %v1034 = vmul.f32 %v806, 0.40261996
    %v1035 = vmul.f32 %v790, 0.40261996
    %v1036 = vmul.f32 %v705, 0.40261996
    %v1037 = vmul.f32 %v807, 0.40261996
    %v1038 = vmul.f32 %v791, 0.40261996
    %v1039 = vmul.f32 %v708, 0.40261996
    %v1040 = vmul.f32 %v808, 0.40261996
    %v1041 = vmul.f32 %v792, 0.40261996
    %v1042 = vmul.f32 %v711, 0.40261996
    %v1043 = vmul.f32 %v809, 0.40261996
    %v1044 = vmul.f32 %v793, 0.40261996
    %v1045 = vmul.f32 %v714, 0.40261996
    %v1046 = vmul.f32 %v810, 0.40261996
    %v1047 = vmul.f32 %v794, 0.40261996
    %v1048 = vmul.f32 %v717, 0.40261996
    %v1049 = vmul.f32 %v811, 0.40261996
    %v1050 = vmul.f32 %v795, 0.40261996
    %v1051 = vmul.f32 %v720, 0.40261996
    %v1052 = vmul.f32 %v812, 0.40261996
    %v1053 = vmul.f32 %v796, 0.40261996
    %v1054 = vmul.f32 %v723, 0.40261996
    %v1055 = vmul.f32 %v813, 0.40261996
    %vm1080 = vcmask 1046528
    %v1081 = vrot.slane %v1008, 1
    %v1082 = vrot.slane %v1009, 1
    %v1083 = vsel %vm1080, %v1081, %v1082
    %v1084 = vrot.slane %v1010, 1
    %v1085 = vsel %vm1080, %v1082, %v1084
    %v1086 = vrot.slane %v1011, 1
    %v1087 = vrot.slane %v1012, 1
    %v1088 = vsel %vm1080, %v1086, %v1087
    %v1089 = vrot.slane %v1013, 1
    %v1090 = vsel %vm1080, %v1087, %v1089
    %v1091 = vrot.slane %v1014, 1
    %v1092 = vrot.slane %v1015, 1
    %v1093 = vsel %vm1080, %v1091, %v1092
    %v1094 = vrot.slane %v1016, 1
    %v1095 = vsel %vm1080, %v1092, %v1094
    %v1096 = vrot.slane %v1017, 1
    %v1097 = vrot.slane %v1018, 1
    %v1098 = vsel %vm1080, %v1096, %v1097
    %v1099 = vrot.slane %v1019, 1
    %v1100 = vsel %vm1080, %v1097, %v1099
    %v1101 = vrot.slane %v1020, 1
    %v1102 = vrot.slane %v1021, 1
    %v1103 = vsel %vm1080, %v1101, %v1102
    %v1104 = vrot.slane %v1022, 1
    %v1105 = vsel %vm1080, %v1102, %v1104
    %v1106 = vrot.slane %v1023, 1
    %v1107 = vrot.slane %v1024, 1
    %v1108 = vsel %vm1080, %v1106, %v1107
    %v1109 = vrot.slane %v1025, 1
    %v1110 = vsel %vm1080, %v1107, %v1109
    %v1111 = vrot.slane %v1026, 1
    %v1112 = vrot.slane %v1027, 1
    %v1113 = vsel %vm1080, %v1111, %v1112
    %v1114 = vrot.slane %v1028, 1
    %v1115 = vsel %vm1080, %v1112, %v1114
    %v1116 = vrot.slane %v1029, 1
    %v1117 = vrot.slane %v1030, 1
    %v1118 = vsel %vm1080, %v1116, %v1117
    %v1119 = vrot.slane %v1031, 1
    %v1120 = vsel %vm1080, %v1117, %v1119
    %v1137 = vadd.f32 %v903, %v1083
    %v1138 = vadd.f32 %v904, %v1085
    %v1139 = vadd.f32 %v905, %v1088
    %v1140 = vadd.f32 %v906, %v1090
    %v1141 = vadd.f32 %v907, %v1093
    %v1142 = vadd.f32 %v908, %v1095
    %v1143 = vadd.f32 %v909, %v1098
    %v1144 = vadd.f32 %v910, %v1100
    %v1145 = vadd.f32 %v911, %v1103
    %v1146 = vadd.f32 %v912, %v1105
    %v1147 = vadd.f32 %v913, %v1108
    %v1148 = vadd.f32 %v914, %v1110
    %v1149 = vadd.f32 %v915, %v1113
    %v1150 = vadd.f32 %v916, %v1115
    %v1151 = vadd.f32 %v917, %v1118
    %v1152 = vadd.f32 %v918, %v1120
    %v1177 = vrot.slane %v1032, 2
    %v1178 = vrot.slane %v1033, 2
    %v1179 = vsel %vm919, %v1177, %v1178
    %v1180 = vrot.slane %v1034, 2
    %v1181 = vsel %vm919, %v1178, %v1180
    %v1182 = vrot.slane %v1035, 2
    %v1183 = vrot.slane %v1036, 2
    %v1184 = vsel %vm919, %v1182, %v1183
    %v1185 = vrot.slane %v1037, 2
    %v1186 = vsel %vm919, %v1183, %v1185
    %v1187 = vrot.slane %v1038, 2
    %v1188 = vrot.slane %v1039, 2
    %v1189 = vsel %vm919, %v1187, %v1188
    %v1190 = vrot.slane %v1040, 2
    %v1191 = vsel %vm919, %v1188, %v1190
    %v1192 = vrot.slane %v1041, 2
    %v1193 = vrot.slane %v1042, 2
    %v1194 = vsel %vm919, %v1192, %v1193
    %v1195 = vrot.slane %v1043, 2
    %v1196 = vsel %vm919, %v1193, %v1195
    %v1197 = vrot.slane %v1044, 2
    %v1198 = vrot.slane %v1045, 2
    %v1199 = vsel %vm919, %v1197, %v1198
    %v1200 = vrot.slane %v1046, 2
    %v1201 = vsel %vm919, %v1198, %v1200
    %v1202 = vrot.slane %v1047, 2
    %v1203 = vrot.slane %v1048, 2
    %v1204 = vsel %vm919, %v1202, %v1203
    %v1205 = vrot.slane %v1049, 2
    %v1206 = vsel %vm919, %v1203, %v1205
    %v1207 = vrot.slane %v1050, 2
    %v1208 = vrot.slane %v1051, 2
    %v1209 = vsel %vm919, %v1207, %v1208
    %v1210 = vrot.slane %v1052, 2
    %v1211 = vsel %vm919, %v1208, %v1210
    %v1212 = vrot.slane %v1053, 2
    %v1213 = vrot.slane %v1054, 2
    %v1214 = vsel %vm919, %v1212, %v1213
    %v1215 = vrot.slane %v1055, 2
    %v1216 = vsel %vm919, %v1213, %v1215
    %v1233 = vadd.f32 %v1137, %v1179
    %v1234 = vadd.f32 %v1138, %v1181
    %v1235 = vadd.f32 %v1139, %v1184
    %v1236 = vadd.f32 %v1140, %v1186
    %v1237 = vadd.f32 %v1141, %v1189
    %v1238 = vadd.f32 %v1142, %v1191
    %v1239 = vadd.f32 %v1143, %v1194
    %v1240 = vadd.f32 %v1144, %v1196
    %v1241 = vadd.f32 %v1145, %v1199
    %v1242 = vadd.f32 %v1146, %v1201
    %v1243 = vadd.f32 %v1147, %v1204
    %v1244 = vadd.f32 %v1148, %v1206
    %v1245 = vadd.f32 %v1149, %v1209
    %v1246 = vadd.f32 %v1150, %v1211
    %v1247 = vadd.f32 %v1151, %v1214
    %v1248 = vadd.f32 %v1152, %v1216
    %vm1249 = vcmask 130048
    %1250 = vst.msk [vmem:[#allocation5] sm:$0xff] %vm1249, %v1233
    %1251 = vst.msk [vmem:[#allocation5 + $0x8] sm:$0xff] %vm1249, %v1234
    %1252 = vst.msk [vmem:[#allocation5 + $0x10] sm:$0xff] %vm1249, %v1235
    %1253 = vst.msk [vmem:[#allocation5 + $0x18] sm:$0xff] %vm1249, %v1236
    %1254 = vst.msk [vmem:[#allocation5 + $0x20] sm:$0xff] %vm1249, %v1237
    %1255 = vst.msk [vmem:[#allocation5 + $0x28] sm:$0xff] %vm1249, %v1238
    %1256 = vst.msk [vmem:[#allocation5 + $0x30] sm:$0xff] %vm1249, %v1239
    %1257 = vst.msk [vmem:[#allocation5 + $0x38] sm:$0xff] %vm1249, %v1240
    %1258 = vst.msk [vmem:[#allocation5 + $0x40] sm:$0xff] %vm1249, %v1241
    %1259 = vst.msk [vmem:[#allocation5 + $0x48] sm:$0xff] %vm1249, %v1242
    %1260 = vst.msk [vmem:[#allocation5 + $0x50] sm:$0xff] %vm1249, %v1243
    %1261 = vst.msk [vmem:[#allocation5 + $0x58] sm:$0xff] %vm1249, %v1244
    %1262 = vst.msk [vmem:[#allocation5 + $0x60] sm:$0xff] %vm1249, %v1245
    %1263 = vst.msk [vmem:[#allocation5 + $0x68] sm:$0xff] %vm1249, %v1246
    %1264 = vst.msk [vmem:[#allocation5 + $0x70] sm:$0xff] %vm1249, %v1247
    %1265 = vst.msk [vmem:[#allocation5 + $0x78] sm:$0xff] %vm1249, %v1248
    // Predicated region
    $region10: #{tpu_custom_call.1} parent=1 // pred_check
      _
    $region11: #{tpu_custom_call.1} parent=1 // pred_check_branch
      %1267 = sbr.rel (0) target = $region13
    $region12: #{tpu_custom_call.1} parent=1 // pred_region
      %s1269 = ssub.s32 2048, 2048
      %1270 = vsyncadd [#allocation4], %s1269
      %s1271 = sshll.u32 [#allocation5], 4
      %s1272 = int_to_ptr.vmem [resolvable:$true] %s1271
      %1277 = dma.vmem_to_hbm [thread:$0]  %s1272, 2048, %s1, [#allocation4], 128, 128, 8
    $region13: #{tpu_custom_call.1} parent=1 // pred_fallthru
      _
    // Predicated region
    $region14: #{tpu_custom_call.1} parent=1 // pred_check
      _
    $region15: #{tpu_custom_call.1} parent=1 // pred_check_branch
      %1279 = sbr.rel (0) target = $region17
    $region16: #{tpu_custom_call.1} parent=1 // pred_region
      %1280 = dma.done [#allocation4], 2048
    $region17: #{tpu_custom_call.1} parent=1 // pred_fallthru
      _
    %1281 = vsyncpa [#allocation3], 1
    %1282 = vsyncpa [#allocation4], 1

</llo_original>
